<compile_context>
chip_gen: v7x
topology: tpu7x:2x2x1
jax: 0.10.0
libtpu: 0.0.40
codegen_flags: <defaults>
</compile_context>

<pallas_src>
import math
import functools

import jax
import jax.numpy as jnp
from jax import lax
from jax.experimental import pallas as pl
from jax.experimental.pallas import tpu as pltpu


def _resample_kernel(ktab_ref, kcnt_ref, msk_ref,          # scalar prefetch (SMEM)
                     tgt_ref, img_ref, avg_ref,             # inputs
                     out_ref,                                # output
                     acc_ref,                                # VMEM scratch
                     *, T, num_n, max_band):
    b = pl.program_id(0)
    n = pl.program_id(1)       # output-pixel tile
    k = pl.program_id(2)       # position inside the (banded) source-tile list
    nk = pl.num_programs(2)

    msk = msk_ref[b] > 0
    cnt = kcnt_ref[b * num_n + n]                    # number of valid source tiles
    kt = ktab_ref[(b * num_n + n) * max_band + k]    # global index of the fetched source tile

    # ---------------- gather path (masked batch elements) ----------------
    @pl.when(msk)
    def _gather():
        @pl.when(k == 0)
        def _init():
            acc_ref[...] = jnp.zeros_like(acc_ref)

        @pl.when(k < cnt)
        def _accumulate():
            tgt = tgt_ref[0]                                    # (1, T) flat source idx, -1 = OOB
            kk = lax.broadcasted_iota(jnp.int32, (T, T), 0)     # local source index within tile kt
            g = (kk == (tgt - kt * T)).astype(jnp.bfloat16)     # one-hot (src, out); 0/1 lossless
            a = img_ref[0].astype(jnp.bfloat16)                 # (C, T) source slab
            acc_ref[...] += jnp.dot(a, g, preferred_element_type=jnp.float32)

        @pl.when(k == nk - 1)
        def _finalize():
            inb = tgt_ref[0] >= 0                               # (1, T) in-bounds mask
            fill = avg_ref[0]                                   # (C, 1) per-channel avg fill
            out = jnp.where(inb, acc_ref[...], fill)
            if jnp.issubdtype(out_ref.dtype, jnp.integer):
                out = jnp.round(out)                            # torch rounds before int cast
            out_ref[0] = out.astype(out_ref.dtype)

    # ---------------- exact pass-through (masked-off batch elements) ----------------
    @pl.when(jnp.logical_and(jnp.logical_not(msk), k == 0))
    def _passthrough():
        out_ref[0] = img_ref[0]                                 # ktab points this DMA at tile n


def ellipse_rotation_affine(image, bbox, avg, mask, key,
                            max_angle=10, lr_flip_prob=0.5, ud_flip_prob=0.5,
                            max_tile=1024):
    """JAX/Pallas equivalent of EllipseRotationAffine.forward."""
    B, C, H, W = image.shape
    HW = H * W
    max_angle = abs(int(max_angle))
    maskb = jnp.asarray(mask).astype(bool)

    # ---- random draws (torch.rand / randint equivalents, plain JAX glue) ----
    ku, ka, kl = jax.random.split(key, 3)
    base_angle = 180.0 * (jax.random.uniform(ku, (B,)) <= ud_flip_prob).astype(jnp.float32)
    angle = jax.random.randint(ka, (B,), -max_angle, max_angle + 1
                               ).astype(jnp.float32) + base_angle
    lr_flip = jax.random.uniform(kl, (B,)) <= lr_flip_prob

    # ---- inverse affine theta (torchvision _get_inverse_affine_matrix, center=[0.5,0.5],
    #      translate=0, scale=1, shear=0, angle negated) ----
    rot = -angle * (math.pi / 180.0)
    cr = jnp.cos(rot)
    sr = jnp.sin(rot)
    t00, t01 = cr, sr
    t10, t11 = -sr, cr
    t02 = 0.5 - 0.5 * (cr + sr)
    t12 = 0.5 + 0.5 * (sr - cr)

    # ---- per-output-pixel nearest source index (hoisted out of the kernel; the
    #      normalize/denormalize round trip cancels algebraically) ----
    p = jnp.arange(HW, dtype=jnp.int32)
    jj = (p % W).astype(jnp.float32)
    ii = (p // W).astype(jnp.float32)
    bx = jj - 0.5 * W + 0.5                          # torchvision base grid
    by = ii - 0.5 * H + 0.5
    sx = t00[:, None] * bx + t01[:, None] * by + t02[:, None] + (0.5 * W - 0.5)
    sy = t10[:, None] * bx + t11[:, None] * by + t12[:, None] + (0.5 * H - 0.5)
    ixr = jnp.round(sx).astype(jnp.int32)
    iyr = jnp.round(sy).astype(jnp.int32)
    inb = (ixr >= 0) & (ixr < W) & (iyr >= 0) & (iyr < H)
    ix_src = jnp.where(lr_flip[:, None], (W - 1) - ixr, ixr)   # L/R flip of the source image
    tgt = jnp.where(inb, iyr * W + ix_src, -1)                  # (B, HW), -1 => fill with avg

    # ---- tiling: single tile for small frames, else pad HW to a multiple of max_tile ----
    if HW <= max_tile:
        T = HW
        HWp = HW
    else:
        T = max_tile                                  # multiple of 128
        HWp = -(-HW // T) * T                         # pad so T always divides the flat axis
    num_n = HWp // T

    pad = HWp - HW
    img_flat = image.reshape(B, C, HW)                # native dtype end-to-end
    if pad:
        img_flat = jnp.pad(img_flat, ((0, 0), (0, 0), (0, pad)))
        tgt_p = jnp.pad(tgt, ((0, 0), (0, pad)), constant_values=-1)
    else:
        tgt_p = tgt

    # ---- band-restricted source-tile table (exact, data-dependent values; static width) ----
    # static bound on how many source tiles one output tile can touch, from max_angle
    sinA = 1.0 if max_angle >= 90 else math.sin(math.radians(max_angle))
    rows_span = (T - 1) // W + 1
    band = ((sinA * (W - 1) + rows_span + 2) * W) / T + 2
    max_band = max(1, min(num_n, int(math.ceil(band)) + 1))

    tgt_tiles = tgt_p.reshape(B, num_n, T)
    valid_t = tgt_tiles >= 0
    st = tgt_tiles // T
    kmin = jnp.min(jnp.where(valid_t, st, num_n), axis=2)       # sentinel num_n when empty
    kmax = jnp.max(jnp.where(valid_t, st, -1), axis=2)
    count = jnp.clip(kmax - kmin + 1, 0, max_band)
    count = jnp.where(maskb[:, None], count, 0)                 # masked-off: no gather steps
    kcnt = count.astype(jnp.int32)                              # (B, num_n)

    karange = jnp.arange(max_band, dtype=jnp.int32)
    k_eff = jnp.minimum(karange[None, None, :], jnp.maximum(count, 1)[..., None] - 1)
    ktab = jnp.clip(kmin[..., None] + k_eff, 0, num_n - 1).astype(jnp.int32)
    # masked-off elements: every step fetches the output tile itself (exact pass-through)
    n_ids = jnp.arange(num_n, dtype=jnp.int32)
    ktab = jnp.where(maskb[:, None, None], ktab, n_ids[None, :, None])

    ktab_flat = ktab.reshape(-1)                                # flat SMEM tables (minimal padding)
    kcnt_flat = kcnt.reshape(-1)
    msk_i32 = maskb.astype(jnp.int32)

    tgt_in = tgt_p.reshape(B, 1, HWp)
    avg_in = avg.reshape(B, C, 1).astype(jnp.float32)

    kernel = functools.partial(_resample_kernel, T=T, num_n=num_n, max_band=max_band)
    out_flat = pl.pallas_call(
        kernel,
        out_shape=jax.ShapeDtypeStruct((B, C, HWp), image.dtype),
        grid_spec=pltpu.PrefetchScalarGridSpec(
            num_scalar_prefetch=3,
            grid=(B, num_n, max_band),
            in_specs=[
                pl.BlockSpec((1, 1, T), lambda b, n, k, kt, kc, mf: (b, 0, n)),   # tgt (out tile)
                pl.BlockSpec((1, C, T),
                             lambda b, n, k, kt, kc, mf:
                             (b, 0, kt[(b * num_n + n) * max_band + k])),         # banded img tile
                pl.BlockSpec((1, C, 1), lambda b, n, k, kt, kc, mf: (b, 0, 0)),   # avg (fill)
            ],
            out_specs=pl.BlockSpec((1, C, T), lambda b, n, k, kt, kc, mf: (b, 0, n)),
            scratch_shapes=[pltpu.VMEM((C, T), jnp.float32)],                     # f32 accumulator
        ),
        compiler_params=pltpu.CompilerParams(
            dimension_semantics=("parallel", "parallel", "arbitrary"),
            vmem_limit_bytes=40 * 1024 * 1024),       # v7x-safe; sweep T/vmem up on v5e/v6e
    )(ktab_flat, kcnt_flat, msk_i32, tgt_in, img_flat, avg_in)

    out_image = out_flat[:, :, :HW].reshape(B, C, H, W)

    # ---- bbox: ellipse-rotation box transform (tiny; plain JAX, matches torch exactly) ----
    bboxf = bbox.astype(jnp.float32)
    rwrh = 0.5 * bboxf[:, 2:4]
    cxcy = bboxf[:, 0:2] + rwrh
    cx = jnp.where(lr_flip, (W - 1.0) - cxcy[:, 0], cxcy[:, 0])
    cy = cxcy[:, 1]
    a_range = jnp.arange(360, dtype=jnp.float32) * (math.pi / 180.0)
    sin_a = jnp.sin(a_range)
    cos_a = jnp.cos(a_range)
    xe = rwrh[:, 0:1] * sin_a[None, :] + cx[:, None]
    ye = rwrh[:, 1:2] * cos_a[None, :] + cy[:, None]
    ang = angle * (math.pi / 180.0)
    alpha = jnp.cos(ang)
    beta = jnp.sin(ang)
    xc, yc = 0.5 * W, 0.5 * H
    tx = alpha[:, None] * xe + beta[:, None] * ye + ((1.0 - alpha) * xc - beta * yc)[:, None]
    ty = (-beta)[:, None] * xe + alpha[:, None] * ye + (beta * xc + (1.0 - alpha) * yc)[:, None]
    new_bbox = jnp.stack([tx.min(1), ty.min(1),
                          tx.max(1) - tx.min(1), ty.max(1) - ty.min(1)], axis=1)
    out_bbox = jnp.where(maskb[:, None], new_bbox, bboxf)
    out_bbox = jnp.maximum(out_bbox, 0.0)             # torch clamps the whole batch
    # torch early-returns untouched inputs when no element is masked; image is already an
    # exact pass-through in that case, only the bbox clamp needs undoing.
    out_bbox = jnp.where(jnp.any(maskb), out_bbox, bboxf).astype(bbox.dtype)

    return out_image, out_bbox, avg, mask


if __name__ == "__main__":
    B, C, H, W = 2, 4, 16, 16
    key = jax.random.PRNGKey(0)
    k_img, k_rand = jax.random.split(key)

    image = jax.random.uniform(k_img, (B, C, H, W), dtype=jnp.float32)
    bbox = jnp.array([[2.0, 3.0, 8.0, 6.0],
                      [4.0, 2.0, 6.0, 9.0]], dtype=jnp.float32)
    avg = image.mean(axis=(2, 3))                    # per-image channel means (the fill values)
    mask = jnp.array([True, False])

    out_image, out_bbox, out_avg, out_mask = ellipse_rotation_affine(
        image, bbox, avg, mask, k_rand,
        max_angle=10, lr_flip_prob=0.5, ud_flip_prob=0.5)

    jax.block_until_ready((out_image, out_bbox, out_avg, out_mask))
    assert out_image.shape == (B, C, H, W)
    assert out_bbox.shape == (B, 4)
    # masked-off batch element must pass through bit-exactly
    assert bool(jnp.all(out_image[1] == image[1]))
    print("KERNEL_OK")
</pallas_src>

<mosaic_0001>
module attributes {stable_mosaic.version = 11 : i64} {
  func.func @_resample_kernel(%arg0: i32, %arg1: i32, %arg2: i32, %arg3: memref<2xi32, #tpu.memory_space<smem>>, %arg4: memref<2xi32, #tpu.memory_space<smem>>, %arg5: memref<2xi32, #tpu.memory_space<smem>>, %arg6: memref<1x1x256xi32, #tpu.memory_space<vmem>>, %arg7: memref<1x4x256xf32, #tpu.memory_space<vmem>>, %arg8: memref<1x4x1xf32, #tpu.memory_space<vmem>>, %arg9: memref<1x4x256xf32, #tpu.memory_space<vmem>>, %arg10: memref<4x256xf32, #tpu.memory_space<vmem>>) attributes {dimension_semantics = [#tpu.dimension_semantics<parallel>, #tpu.dimension_semantics<parallel>, #tpu.dimension_semantics<arbitrary>], iteration_bounds = array<i64: 2, 1, 1>, scalar_prefetch = 3 : i64, scratch_operands = 1 : i64, tpu.core_type = #tpu.core_type<tc>, window_params = [{transform_indices = @transform_0, window_bounds = array<i64: 1, 1, 256>}, {transform_indices = @transform_1, window_bounds = array<i64: 1, 4, 256>}, {transform_indices = @transform_2, window_bounds = array<i64: 1, 4, 1>}, {transform_indices = @transform_3, window_bounds = array<i64: 1, 4, 256>}]} {
    %0 = arith.index_cast %arg0 : i32 to index
    %1 = memref.load %arg5[%0] : memref<2xi32, #tpu.memory_space<smem>>
    %c0_i32 = arith.constant 0 : i32
    %2 = arith.cmpi sgt, %1, %c0_i32 : i32
    %c1_i32 = arith.constant 1 : i32
    %3 = arith.muli %arg0, %c1_i32 : i32
    %4 = arith.addi %3, %arg1 : i32
    %5 = arith.index_cast %4 : i32 to index
    %6 = memref.load %arg4[%5] : memref<2xi32, #tpu.memory_space<smem>>
    %c1_i32_0 = arith.constant 1 : i32
    %7 = arith.muli %arg0, %c1_i32_0 : i32
    %8 = arith.addi %7, %arg1 : i32
    %c1_i32_1 = arith.constant 1 : i32
    %9 = arith.muli %8, %c1_i32_1 : i32
    %10 = arith.addi %9, %arg2 : i32
    %11 = arith.index_cast %10 : i32 to index
    %12 = memref.load %arg3[%11] : memref<2xi32, #tpu.memory_space<smem>>
    %13 = arith.extui %2 : i1 to i32
    %c0_i32_2 = arith.constant 0 : i32
    %14 = arith.cmpi ne, %13, %c0_i32_2 : i32
    scf.if %14 {
      %c0_i32_5 = arith.constant 0 : i32
      %20 = arith.cmpi eq, %arg2, %c0_i32_5 : i32
      %21 = arith.extui %20 : i1 to i32
      %c0_i32_6 = arith.constant 0 : i32
      %22 = arith.cmpi ne, %21, %c0_i32_6 : i32
      scf.if %22 {
        %cst = arith.constant 0.000000e+00 : f32
        %29 = vector.broadcast %cst : f32 to vector<4x256xf32>
        %c0 = arith.constant 0 : index
        %c0_10 = arith.constant 0 : index
        %30 = vector.load %arg10[%c0, %c0_10] : memref<4x256xf32, #tpu.memory_space<vmem>>, vector<4x256xf32>
        tpu.vector_store %arg10[%c0, %c0_10], %29 {strides = array<i32>} : memref<4x256xf32, #tpu.memory_space<vmem>>, vector<4x256xf32>,
      } else {
      }
      %23 = arith.cmpi slt, %arg2, %6 : i32
      %24 = arith.extui %23 : i1 to i32
      %c0_i32_7 = arith.constant 0 : i32
      %25 = arith.cmpi ne, %24, %c0_i32_7 : i32
      scf.if %25 {
        %c0 = arith.constant 0 : index
        %c0_10 = arith.constant 0 : index
        %c0_11 = arith.constant 0 : index
        %29 = vector.load %arg6[%c0, %c0_10, %c0_11] : memref<1x1x256xi32, #tpu.memory_space<vmem>>, vector<1x1x256xi32>
        %30 = vector.shape_cast %29 : vector<1x1x256xi32> to vector<1x256xi32>
        %31 = tpu.iota {dimensions = array<i32: 0>} : vector<256x256xi32>
        %c256_i32 = arith.constant 256 : i32
        %32 = arith.muli %12, %c256_i32 : i32
        %33 = vector.broadcast %32 : i32 to vector<1x256xi32>
        %34 = arith.subi %30, %33 : vector<1x256xi32>
        %35 = vector.broadcast %34 : vector<1x256xi32> to vector<256x256xi32>
        %36 = arith.cmpi eq, %31, %35 : vector<256x256xi32>
        %37 = arith.extui %36 : vector<256x256xi1> to vector<256x256xi32>
        %38 = arith.sitofp %37 : vector<256x256xi32> to vector<256x256xf32>
        %39 = arith.truncf %38 : vector<256x256xf32> to vector<256x256xbf16>
        %c0_12 = arith.constant 0 : index
        %c0_13 = arith.constant 0 : index
        %c0_14 = arith.constant 0 : index
        %40 = vector.load %arg7[%c0_12, %c0_13, %c0_14] : memref<1x4x256xf32, #tpu.memory_space<vmem>>, vector<1x4x256xf32>
        %41 = vector.shape_cast %40 : vector<1x4x256xf32> to vector<4x256xf32>
        %42 = arith.truncf %41 : vector<4x256xf32> to vector<4x256xbf16>
        %c0_15 = arith.constant 0 : index
        %c0_16 = arith.constant 0 : index
        %43 = vector.load %arg10[%c0_15, %c0_16] : memref<4x256xf32, #tpu.memory_space<vmem>>, vector<4x256xf32>
        %cst = arith.constant dense<0.000000e+00> : vector<4x256xf32>
        %44 = tpu.matmul %42, %39, %cst {dimension_numbers = #tpu.dot_dimension_numbers<[1], [0], [0], [1], [0, 0, 1, 1], [], []>} : vector<4x256xbf16>, vector<256x256xbf16>, vector<4x256xf32> -> vector<4x256xf32>
        %45 = arith.addf %43, %44 : vector<4x256xf32>
        %c0_17 = arith.constant 0 : index
        %c0_18 = arith.constant 0 : index
        %46 = vector.load %arg10[%c0_17, %c0_18] : memref<4x256xf32, #tpu.memory_space<vmem>>, vector<4x256xf32>
        tpu.vector_store %arg10[%c0_17, %c0_18], %45 {strides = array<i32>} : memref<4x256xf32, #tpu.memory_space<vmem>>, vector<4x256xf32>,
      } else {
      }
      %c0_i32_8 = arith.constant 0 : i32
      %26 = arith.cmpi eq, %arg2, %c0_i32_8 : i32
      %27 = arith.extui %26 : i1 to i32
      %c0_i32_9 = arith.constant 0 : i32
      %28 = arith.cmpi ne, %27, %c0_i32_9 : i32
      scf.if %28 {
        %c0 = arith.constant 0 : index
        %c0_10 = arith.constant 0 : index
        %c0_11 = arith.constant 0 : index
        %29 = vector.load %arg6[%c0, %c0_10, %c0_11] : memref<1x1x256xi32, #tpu.memory_space<vmem>>, vector<1x1x256xi32>
        %30 = vector.shape_cast %29 : vector<1x1x256xi32> to vector<1x256xi32>
        %c0_i32_12 = arith.constant 0 : i32
        %31 = vector.broadcast %c0_i32_12 : i32 to vector<1x256xi32>
        %32 = arith.cmpi sge, %30, %31 : vector<1x256xi32>
        %c0_13 = arith.constant 0 : index
        %c0_14 = arith.constant 0 : index
        %c0_15 = arith.constant 0 : index
        %33 = vector.load %arg8[%c0_13, %c0_14, %c0_15] : memref<1x4x1xf32, #tpu.memory_space<vmem>>, vector<1x4x1xf32>
        %34 = vector.shape_cast %33 : vector<1x4x1xf32> to vector<4x1xf32>
        %c0_16 = arith.constant 0 : index
        %c0_17 = arith.constant 0 : index
        %35 = vector.load %arg10[%c0_16, %c0_17] : memref<4x256xf32, #tpu.memory_space<vmem>>, vector<4x256xf32>
        %36 = vector.shape_cast %32 : vector<1x256xi1> to vector<1x256xi1>
        %37 = vector.broadcast %36 : vector<1x256xi1> to vector<4x256xi1>
        %38 = vector.shape_cast %34 : vector<4x1xf32> to vector<4x1xf32>
        %39 = vector.broadcast %38 : vector<4x1xf32> to vector<4x256xf32>
        %40 = arith.select %37, %35, %39 : vector<4x256xi1>, vector<4x256xf32>
        %c0_18 = arith.constant 0 : index
        %c0_19 = arith.constant 0 : index
        %c0_20 = arith.constant 0 : index
        %41 = vector.load %arg9[%c0_18, %c0_19, %c0_20] : memref<1x4x256xf32, #tpu.memory_space<vmem>>, vector<1x4x256xf32>
        %42 = vector.shape_cast %41 : vector<1x4x256xf32> to vector<4x256xf32>
        %43 = vector.shape_cast %40 : vector<4x256xf32> to vector<1x4x256xf32>
        tpu.vector_store %arg9[%c0_18, %c0_19, %c0_20], %43 {strides = array<i32>} : memref<1x4x256xf32, #tpu.memory_space<vmem>>, vector<1x4x256xf32>,
      } else {
      }
    } else {
    }
    %true = arith.constant true
    %15 = arith.xori %2, %true : i1
    %c0_i32_3 = arith.constant 0 : i32
    %16 = arith.cmpi eq, %arg2, %c0_i32_3 : i32
    %17 = arith.andi %15, %16 : i1
    %18 = arith.extui %17 : i1 to i32
    %c0_i32_4 = arith.constant 0 : i32
    %19 = arith.cmpi ne, %18, %c0_i32_4 : i32
    scf.if %19 {
      %c0 = arith.constant 0 : index
      %c0_5 = arith.constant 0 : index
      %c0_6 = arith.constant 0 : index
      %20 = vector.load %arg7[%c0, %c0_5, %c0_6] : memref<1x4x256xf32, #tpu.memory_space<vmem>>, vector<1x4x256xf32>
      %21 = vector.shape_cast %20 : vector<1x4x256xf32> to vector<4x256xf32>
      %c0_7 = arith.constant 0 : index
      %c0_8 = arith.constant 0 : index
      %c0_9 = arith.constant 0 : index
      %22 = vector.load %arg9[%c0_7, %c0_8, %c0_9] : memref<1x4x256xf32, #tpu.memory_space<vmem>>, vector<1x4x256xf32>
      %23 = vector.shape_cast %22 : vector<1x4x256xf32> to vector<4x256xf32>
      %24 = vector.shape_cast %21 : vector<4x256xf32> to vector<1x4x256xf32>
      tpu.vector_store %arg9[%c0_7, %c0_8, %c0_9], %24 {strides = array<i32>} : memref<1x4x256xf32, #tpu.memory_space<vmem>>, vector<1x4x256xf32>,
    } else {
    }
    return
  }
  func.func @transform_0(%arg0: i32, %arg1: i32, %arg2: i32, %arg3: memref<2xi32, #tpu.memory_space<smem>>, %arg4: memref<2xi32, #tpu.memory_space<smem>>, %arg5: memref<2xi32, #tpu.memory_space<smem>>) -> (i32, i32, i32) {
    %c0_i32 = arith.constant 0 : i32
    %c0_i32_0 = arith.constant 0 : i32
    return %arg0, %c0_i32, %arg1 : i32, i32, i32
  }
  func.func @transform_1(%arg0: i32, %arg1: i32, %arg2: i32, %arg3: memref<2xi32, #tpu.memory_space<smem>>, %arg4: memref<2xi32, #tpu.memory_space<smem>>, %arg5: memref<2xi32, #tpu.memory_space<smem>>) -> (i32, i32, i32) {
    %c1_i32 = arith.constant 1 : i32
    %0 = arith.muli %arg0, %c1_i32 : i32
    %1 = arith.addi %0, %arg1 : i32
    %c1_i32_0 = arith.constant 1 : i32
    %2 = arith.muli %1, %c1_i32_0 : i32
    %3 = arith.addi %2, %arg2 : i32
    %4 = arith.index_cast %3 : i32 to index
    %5 = memref.load %arg3[%4] : memref<2xi32, #tpu.memory_space<smem>>
    %c0_i32 = arith.constant 0 : i32
    %c0_i32_1 = arith.constant 0 : i32
    return %arg0, %c0_i32, %5 : i32, i32, i32
  }
  func.func @transform_2(%arg0: i32, %arg1: i32, %arg2: i32, %arg3: memref<2xi32, #tpu.memory_space<smem>>, %arg4: memref<2xi32, #tpu.memory_space<smem>>, %arg5: memref<2xi32, #tpu.memory_space<smem>>) -> (i32, i32, i32) {
    %c0_i32 = arith.constant 0 : i32
    %c0_i32_0 = arith.constant 0 : i32
    %c0_i32_1 = arith.constant 0 : i32
    return %arg0, %c0_i32, %c0_i32_0 : i32, i32, i32
  }
  func.func @transform_3(%arg0: i32, %arg1: i32, %arg2: i32, %arg3: memref<2xi32, #tpu.memory_space<smem>>, %arg4: memref<2xi32, #tpu.memory_space<smem>>, %arg5: memref<2xi32, #tpu.memory_space<smem>>) -> (i32, i32, i32) {
    %c0_i32 = arith.constant 0 : i32
    %c0_i32_0 = arith.constant 0 : i32
    return %arg0, %c0_i32, %arg1 : i32, i32, i32
  }
}

</mosaic_0001>

<llo_original>
// kernel: tpu_custom_call.1
$region0: #{tpu_custom_call.1}
  #allocation0 [shape = 'u32[]', space=smem, size = 0x4, offset = 0x4, fixed_abs, tag = 'smem constant byte address 0x4 - core index']
  #allocation1 [shape = 'u32[144,128]{1,0:T(1,128)}', space=vmem, size = 0x12000, scoped, tag = 'internal scratch']
  #allocation2 [shape = 'f32[4,256]{1,0:T(4,128)}', space=vmem, size = 0x1000, scoped, tag = 'scratch operand']
  #allocation3 [shape = 's32[1]{0}', space=sflag, size = 0x4, scoped, tag = 'scoped memory for tpu_custom_call.1']
  #allocation4 [shape = 'u8[512]{0}', space=smem, size = 0x200, scoped, tag = 'prefetched SMEM operand 0']
  #allocation5 [shape = 'u8[512]{0}', space=smem, size = 0x200, scoped, tag = 'prefetched SMEM operand 1']
  #allocation6 [shape = 'u8[512]{0}', space=smem, size = 0x200, scoped, tag = 'prefetched SMEM operand 2']
  %s0 = inlined_call_operand.vmem [shape: s32[2], index: 0, kind: input, shape index: {}]
  %s1 = inlined_call_operand.vmem [shape: s32[2], index: 1, kind: input, shape index: {}]
  %s2 = inlined_call_operand.vmem [shape: s32[2], index: 2, kind: input, shape index: {}]
  %s3 = inlined_call_operand.vmem [shape: s32[2,1,256], index: 3, kind: input, shape index: {}]
  %s4 = inlined_call_operand.vmem [shape: f32[2,4,256], index: 4, kind: input, shape index: {}]
  %s5 = inlined_call_operand.vmem [shape: f32[2,4,1], index: 5, kind: input, shape index: {}]
  %s6 = inlined_call_operand.hbm [shape: f32[2,4,256], index: 6, kind: output, shape index: {}]
  %s7 = sld [smem:[#allocation0]]
  $region65: #{tpu_custom_call.1} parent=0
    _
  %s9 = ssub.s32 1, %s7
  %s10 = scalar_select 0, %s9, %s7
  %s11 = sshll.u32 %s0, 4
  %s12 = int_to_ptr.vmem [resolvable:$true] %s11
  %14 = dma.vmem_to_smem %s12, 16, [#allocation4], [#allocation3]
  %s15 = sshll.u32 %s1, 4
  %s16 = int_to_ptr.vmem [resolvable:$true] %s15
  %18 = dma.vmem_to_smem %s16, 16, [#allocation5], [#allocation3]
  %s19 = sshll.u32 %s2, 4
  %s20 = int_to_ptr.vmem [resolvable:$true] %s19
  %22 = dma.vmem_to_smem %s20, 16, [#allocation6], [#allocation3]
  %23 = dma.done [#allocation3], 48
  %24 = sfence
  $region1: #{tpu_custom_call.1} parent=0
    #allocation7 [shape = 'u8[8192]{0}', space=vmem, size = 0x2000, scoped, tag = 'output window, operand 0']
    #allocation8 [shape = 's32[2]{0}', space=sflag, size = 0x8, scoped, tag = 'scoped memory for tpu_custom_call.1']
    %25 = vsyncpa [#allocation8], 0
    %s26 = scalar_lea.sflag [#allocation8], 1
    %27 = vsyncpa %s26, 0
    loop: start=0, step=1, limit=4
    $region2: #{tpu_custom_call.1} parent=1 // loop_pre_header
      _
    $region3: #{tpu_custom_call.1} parent=1 // loop_header
      %s29 = sphi 0, %s33
      %p30 = scmp.ge.s32.totalorder %s29, 4
      %s36 = sphi 0, %s55
      %s37 = sphi 0, %s51
      %s38 = sphi 0, %s47
      %s39 = sphi 0, %s36
      %s40 = sphi 0, %s37
      %s41 = sphi 0, %s38
      %s42 = sphi 0, %s39
      %s43 = sphi 0, %s40
      %s44 = sphi 0, %s41
      %s60 = sphi 0, %s62
      %s63 = sphi 0, %s60
      %s64 = sphi 0, %s63
      %s80 = sphi 0, %s64
      %s94 = sphi 0, %s96
      %s97 = sphi 0, %s94
      %s98 = sphi 0, %s97
      %s114 = sphi 0, %s98
      %s120 = sphi 0, %s122
      %s123 = sphi 0, %s120
      %s124 = sphi 0, %s123
      %s140 = sphi 0, %s124
      %s148 = sphi 0, %s150
      %s151 = sphi 0, %s148
      %s152 = sphi 0, %s151
      %s168 = sphi 0, %s152
    $region4: #{tpu_custom_call.1} parent=1 // loop_header_branch
      %32 = sbr.rel (%p30) target = $region8
    $region5: #{tpu_custom_call.1} parent=1 // loop_body
      %s34 = ssub.s32 %s29, 1
      %s35 = ssub.s32 %s29, 2
      %s45 = sadd.s32 1, %s38
      %p46 = scmp.ge.s32.totalorder %s45, 1
      %s47 = scalar_select %p46, 0, %s45
      %s48 = sadd.s32 1, %s37
      %s49 = scalar_select %p46, %s48, %s37
      %p50 = scmp.ge.s32.totalorder %s49, 1
      %s51 = scalar_select %p50, 0, %s49
      %s52 = sadd.s32 1, %s36
      %s53 = scalar_select %p50, %s52, %s36
      %p54 = scmp.ge.s32.totalorder %s53, 2
      %s55 = scalar_select %p54, 0, %s53
      %s56 = ssub.s32 %s36, %s55
      %s57 = ssub.s32 %s37, %s51
      %s58 = sor.u32 %s56, %s57
      %p59 = scmp.eq.s32.totalorder %s58, 0
      %s61 = sadd.s32 %s60, 1
      %s62 = scalar_select %p59, %s60, %s61
      %p65 = pneg %p59
      %p66 = scmp.eq.s32.totalorder %s29, 1
      %p67 = por %p65, %p66
      %p68 = scmp.ne.s32.totalorder %s60, %s63
      %p69 = scmp.eq.s32.totalorder %s29, 0
      %p70 = por %p68, %p69
      %p71 = scmp.ne.s32.totalorder %s60, %s63
      %p72 = scmp.eq.s32.totalorder %s34, 1
      %p73 = por %p71, %p72
      %p74 = scmp.ne.s32.totalorder %s63, %s64
      %p75 = scmp.eq.s32.totalorder %s34, 0
      %p76 = por %p74, %p75
      %p77 = scmp.ne.s32.totalorder %s63, %s64
      %p78 = scmp.eq.s32.totalorder %s35, 1
      %p79 = por %p77, %p78
      %p81 = scmp.ne.s32.totalorder %s64, %s80
      %p82 = scmp.eq.s32.totalorder %s35, 0
      %p83 = por %p81, %p82
      %s84 = sadd.s32 %s36, %s37
      %s85 = sadd.s32 %s84, %s38
      %s86 = sld [smem:[#allocation4 + %s85]]
      %s87 = sadd.s32 %s55, %s51
      %s88 = sadd.s32 %s87, %s47
      %s89 = sld [smem:[#allocation4 + %s88]]
      %s90 = ssub.s32 %s36, %s55
      %s91 = ssub.s32 %s86, %s89
      %s92 = sor.u32 %s90, %s91
      %p93 = scmp.eq.s32.totalorder %s92, 0
      %s95 = sadd.s32 %s94, 1
      %s96 = scalar_select %p93, %s94, %s95
      %p99 = pneg %p93
      %p100 = scmp.eq.s32.totalorder %s29, 1
      %p101 = por %p99, %p100
      %p102 = scmp.ne.s32.totalorder %s94, %s97
      %p103 = scmp.eq.s32.totalorder %s29, 0
      %p104 = por %p102, %p103
      %p105 = scmp.ne.s32.totalorder %s94, %s97
      %p106 = scmp.eq.s32.totalorder %s34, 1
      %p107 = por %p105, %p106
      %p108 = scmp.ne.s32.totalorder %s97, %s98
      %p109 = scmp.eq.s32.totalorder %s34, 0
      %p110 = por %p108, %p109
      %p111 = scmp.ne.s32.totalorder %s97, %s98
      %p112 = scmp.eq.s32.totalorder %s35, 1
      %p113 = por %p111, %p112
      %p115 = scmp.ne.s32.totalorder %s98, %s114
      %p116 = scmp.eq.s32.totalorder %s35, 0
      %p117 = por %p115, %p116
      %s118 = ssub.s32 %s36, %s55
      %p119 = scmp.eq.s32.totalorder %s118, 0
      %s121 = sadd.s32 %s120, 1
      %s122 = scalar_select %p119, %s120, %s121
      %p125 = pneg %p119
      %p126 = scmp.eq.s32.totalorder %s29, 1
      %p127 = por %p125, %p126
      %p128 = scmp.ne.s32.totalorder %s120, %s123
      %p129 = scmp.eq.s32.totalorder %s29, 0
      %p130 = por %p128, %p129
      %p131 = scmp.ne.s32.totalorder %s120, %s123
      %p132 = scmp.eq.s32.totalorder %s34, 1
      %p133 = por %p131, %p132
      %p134 = scmp.ne.s32.totalorder %s123, %s124
      %p135 = scmp.eq.s32.totalorder %s34, 0
      %p136 = por %p134, %p135
      %p137 = scmp.ne.s32.totalorder %s123, %s124
      %p138 = scmp.eq.s32.totalorder %s35, 1
      %p139 = por %p137, %p138
      %p141 = scmp.ne.s32.totalorder %s124, %s140
      %p142 = scmp.eq.s32.totalorder %s35, 0
      %p143 = por %p141, %p142
      %s144 = ssub.s32 %s36, %s55
      %s145 = ssub.s32 %s37, %s51
      %s146 = sor.u32 %s144, %s145
      %p147 = scmp.eq.s32.totalorder %s146, 0
      %s149 = sadd.s32 %s148, 1
      %s150 = scalar_select %p147, %s148, %s149
      %p153 = pneg %p147
      %p154 = scmp.eq.s32.totalorder %s29, 1
      %p155 = por %p153, %p154
      %p156 = scmp.ne.s32.totalorder %s148, %s151
      %p157 = scmp.eq.s32.totalorder %s29, 0
      %p158 = por %p156, %p157
      %p159 = scmp.ne.s32.totalorder %s148, %s151
      %p160 = scmp.eq.s32.totalorder %s34, 1
      %p161 = por %p159, %p160
      %p162 = scmp.ne.s32.totalorder %s151, %s152
      %p163 = scmp.eq.s32.totalorder %s34, 0
      %p164 = por %p162, %p163
      %p165 = scmp.ne.s32.totalorder %s151, %s152
      %p166 = scmp.eq.s32.totalorder %s35, 1
      %p167 = por %p165, %p166
      %p169 = scmp.ne.s32.totalorder %s152, %s168
      %p170 = scmp.eq.s32.totalorder %s35, 0
      %p171 = por %p169, %p170
      %p172 = scmp.le.s32.totalorder 1, %s29
      %p173 = scmp.lt.s32.totalorder %s29, 3
      %p174 = pnand %p172, %p173
      %p175 = pneg %p174
      // Predicated region
      $region9: #{tpu_custom_call.1} parent=5 // pred_check
        _
      $region10: #{tpu_custom_call.1} parent=5 // pred_check_branch
        %177 = sbr.rel (%p174) target = $region12
      $region11: #{tpu_custom_call.1} parent=5 // pred_region
        %s178 = ssub.s32 %s29, 1
      $region12: #{tpu_custom_call.1} parent=5 // pred_fallthru
        _
      %p179 = scmp.lt.s32.totalorder %s29, 2
      // Predicated region
      $region13: #{tpu_custom_call.1} parent=5 // pred_check
        %p180 = pneg %p179
      $region14: #{tpu_custom_call.1} parent=5 // pred_check_branch
        %182 = sbr.rel (%p180) target = $region16
      $region15: #{tpu_custom_call.1} parent=5 // pred_region
        // Predicated region
        $region17: #{tpu_custom_call.1} parent=15 // pred_check
          %p183 = pneg %p70
        $region18: #{tpu_custom_call.1} parent=15 // pred_check_branch
          %185 = sbr.rel (%p183) target = $region20
        $region19: #{tpu_custom_call.1} parent=15 // pred_region
          %s186 = smul.u32 2, %s37
          %p187 = scmp.lt.s32.totalorder %s36, 1
          %s188 = scalar_select %p187, %s36, 1
          %p189 = scmp.lt.s32.totalorder %s186, 1
          %s190 = scalar_select %p189, %s186, 1
          %s191 = smul.addr %s188, 2
          %s192 = sadd.s32 %s190, %s191
          %s193 = scalar_lea.vmem %s3, %s192
          %s194 = smul.u32 2, %s37
        $region20: #{tpu_custom_call.1} parent=15 // pred_fallthru
          _
        // Predicated region
        $region21: #{tpu_custom_call.1} parent=15 // pred_check
          %p195 = pneg %p104
        $region22: #{tpu_custom_call.1} parent=15 // pred_check_branch
          %197 = sbr.rel (%p195) target = $region24
        $region23: #{tpu_custom_call.1} parent=15 // pred_region
          %s198 = sadd.s32 %s36, %s37
          %s199 = sadd.s32 %s198, %s38
          %s200 = sld [smem:[#allocation4 + %s199]]
          %s201 = smul.u32 2, %s200
          %p202 = scmp.lt.s32.totalorder %s36, 1
          %s203 = scalar_select %p202, %s36, 1
          %p204 = scmp.lt.s32.totalorder %s201, 1
          %s205 = scalar_select %p204, %s201, 1
          %s206 = smul.addr %s203, 2
          %s207 = sadd.s32 %s205, %s206
          %s208 = smul.addr %s207, 4
          %s209 = scalar_lea.vmem %s4, %s208
          %s210 = sadd.s32 %s36, %s37
          %s211 = sadd.s32 %s210, %s38
          %s212 = sld [smem:[#allocation4 + %s211]]
          %s213 = smul.u32 2, %s212
        $region24: #{tpu_custom_call.1} parent=15 // pred_fallthru
          _
        // Predicated region
        $region25: #{tpu_custom_call.1} parent=15 // pred_check
          %p214 = pneg %p130
        $region26: #{tpu_custom_call.1} parent=15 // pred_check_branch
          %216 = sbr.rel (%p214) target = $region28
        $region27: #{tpu_custom_call.1} parent=15 // pred_region
          %p217 = scmp.lt.s32.totalorder %s36, 1
          %s218 = scalar_select %p217, %s36, 1
          %s219 = smul.addr %s218, 4
          %s220 = scalar_lea.vmem %s5, %s219
        $region28: #{tpu_custom_call.1} parent=15 // pred_fallthru
          _
      $region16: #{tpu_custom_call.1} parent=5 // pred_fallthru
        _
      %p221 = scmp.le.s32.totalorder 1, %s29
      %p222 = scmp.lt.s32.totalorder %s29, 3
      %p223 = pnand %p221, %p222
      %p224 = pneg %p223
      // Predicated region
      $region29: #{tpu_custom_call.1} parent=5 // pred_check
        _
      $region30: #{tpu_custom_call.1} parent=5 // pred_check_branch
        %226 = sbr.rel (%p223) target = $region32
      $region31: #{tpu_custom_call.1} parent=5 // pred_region
        %s227 = ssub.s32 %s29, 1
        %s228 = smul.u32 2, %s40
        %p229 = scmp.lt.s32.totalorder %s39, 1
        %s230 = scalar_select %p229, %s39, 1
        %p231 = scmp.lt.s32.totalorder %s228, 1
        %s232 = scalar_select %p231, %s228, 1
        %s233 = smul.addr %s230, 2
        %s234 = sadd.s32 %s232, %s233
        %s235 = scalar_lea.vmem %s3, %s234
        %p236 = pneg %p76
        %p237 = pneg %p73
        %s238 = sadd.s32 %s39, %s40
        %s239 = sadd.s32 %s238, %s41
        %s240 = sld [smem:[#allocation4 + %s239]]
        %s241 = smul.u32 2, %s240
        %p242 = scmp.lt.s32.totalorder %s39, 1
        %s243 = scalar_select %p242, %s39, 1
        %p244 = scmp.lt.s32.totalorder %s241, 1
        %s245 = scalar_select %p244, %s241, 1
        %s246 = smul.addr %s243, 2
        %s247 = sadd.s32 %s245, %s246
        %s248 = smul.addr %s247, 4
        %s249 = scalar_lea.vmem %s4, %s248
        %p250 = pneg %p110
        %p251 = pneg %p107
        %p252 = scmp.lt.s32.totalorder %s39, 1
        %s253 = scalar_select %p252, %s39, 1
        %s254 = smul.addr %s253, 4
        %s255 = scalar_lea.vmem %s5, %s254
        %p256 = pneg %p136
        %p257 = pneg %p133
        %p258 = pneg %p164
        %p259 = pneg %p161
        %s260 = sand.u32 %s151, 1
        %s261 = scalar_lea.sflag [#allocation8], %s260
        %s262 = sand.u32 %s151, 1
        %s263 = smul.addr %s262, 8
        %s264 = scalar_lea.vmem [#allocation7], %s263
        %s265 = smul.u32 2, %s40
        %p266 = scmp.lt.s32.totalorder %s39, 1
        %s267 = scalar_select %p266, %s39, 1
        %p268 = scmp.lt.s32.totalorder %s265, 1
        %s269 = scalar_select %p268, %s265, 1
        %s270 = smul.addr %s267, 2
        %s271 = sadd.s32 %s269, %s270
        %s272 = scalar_lea.vmem %s3, %s271
        %s273 = smul.u32 2, %s40
        %s274 = sadd.s32 %s39, %s40
        %s275 = sadd.s32 %s274, %s41
        %s276 = sld [smem:[#allocation4 + %s275]]
        %s277 = smul.u32 2, %s276
        %p278 = scmp.lt.s32.totalorder %s39, 1
        %s279 = scalar_select %p278, %s39, 1
        %p280 = scmp.lt.s32.totalorder %s277, 1
        %s281 = scalar_select %p280, %s277, 1
        %s282 = smul.addr %s279, 2
        %s283 = sadd.s32 %s281, %s282
        %s284 = smul.addr %s283, 4
        %s285 = scalar_lea.vmem %s4, %s284
        %s286 = sadd.s32 %s39, %s40
        %s287 = sadd.s32 %s286, %s41
        %s288 = sld [smem:[#allocation4 + %s287]]
        %s289 = smul.u32 2, %s288
        %p290 = scmp.lt.s32.totalorder %s39, 1
        %s291 = scalar_select %p290, %s39, 1
        %s292 = smul.addr %s291, 4
        %s293 = scalar_lea.vmem %s5, %s292
        %s294 = smul.u32 2, %s40
        %s295 = sld [smem:[#allocation6 + %s39]]
        %p296 = scmp.gt.s32.totalorder %s295, 0
        %s297 = sadd.s32 %s39, %s40
        %s298 = sld [smem:[#allocation5 + %s297]]
        %s299 = sadd.s32 %s297, %s41
        %s300 = sld [smem:[#allocation4 + %s299]]
        // Predicated region
        $region33: #{tpu_custom_call.1} parent=31 // pred_check
          %p301 = pneg %p296
        $region34: #{tpu_custom_call.1} parent=31 // pred_check_branch
          %303 = sbr.rel (%p301) target = $region36
        $region35: #{tpu_custom_call.1} parent=31 // pred_region
          %p304 = scmp.eq.s32.totalorder %s41, 0
          // Predicated region
          $region37: #{tpu_custom_call.1} parent=35 // pred_check
            %p305 = pneg %p304
          $region38: #{tpu_custom_call.1} parent=35 // pred_check_branch
            %307 = sbr.rel (%p305) target = $region40
          $region39: #{tpu_custom_call.1} parent=35 // pred_region
            %308 = vst [vmem:[#allocation2] sm:$0xff] 0.0
          $region40: #{tpu_custom_call.1} parent=35 // pred_fallthru
            _
          %p309 = scmp.lt.s32.totalorder %s41, %s298
          // Predicated region
          $region41: #{tpu_custom_call.1} parent=35 // pred_check
            %p310 = pneg %p309
          $region42: #{tpu_custom_call.1} parent=35 // pred_check_branch
            %312 = sbr.rel (%p310) target = $region44
          $region43: #{tpu_custom_call.1} parent=35 // pred_region
            %v313 = vld [vmem:[%s272] sm:$0x3]
            %v314 = vlaneseq
            %v315 = vshrl.u32 %v314, 7
            %v316 = vadd.s32 %v315, 8
            %v317 = vadd.s32 %v315, 16
            %v318 = vadd.s32 %v315, 24
            %v319 = vadd.s32 %v315, 32
            %v320 = vadd.s32 %v315, 40
            %v321 = vadd.s32 %v315, 48
            %v322 = vadd.s32 %v315, 56
            %v323 = vadd.s32 %v315, 64
            %v324 = vadd.s32 %v315, 72
            %v325 = vadd.s32 %v315, 80
            %v326 = vadd.s32 %v315, 88
            %v327 = vadd.s32 %v315, 96
            %v328 = vadd.s32 %v315, 104
            %v329 = vadd.s32 %v315, 112
            %v330 = vadd.s32 %v315, 120
            %v331 = vadd.s32 %v315, 128
            %v332 = vadd.s32 %v315, 136
            %v333 = vadd.s32 %v315, 144
            %v334 = vadd.s32 %v315, 152
            %v335 = vadd.s32 %v315, 160
            %v336 = vadd.s32 %v315, 168
            %v337 = vadd.s32 %v315, 176
            %v338 = vadd.s32 %v315, 184
            %v339 = vadd.s32 %v315, 192
            %v340 = vadd.s32 %v315, 200
            %v341 = vadd.s32 %v315, 208
            %v342 = vadd.s32 %v315, 216
            %v343 = vadd.s32 %v315, 224
            %v344 = vadd.s32 %v315, 232
            %v345 = vadd.s32 %v315, 240
            %v346 = vadd.s32 %v315, 248
            %s347 = smul.u32 %s300, 256
            %v348 = vstv %s347
            %v349 = vsub.s32 %v313, %v348
            %v350 = vlaneseq
            %v351 = vshrl.u32 %v350, 7
            %v352 = vsub.s32 0, %v351
            %v353 = vrot.slane %v349, %v352
            %v354 = vlaneseq
            %v355 = vshrl.u32 %v354, 7
            %v356 = vsub.s32 1, %v355
            %v357 = vrot.slane %v349, %v356
            %vm358 = vcmp.eq.s32.totalorder %v315, %v353
            %vm359 = vcmp.eq.s32.totalorder %v315, %v357
            %vm360 = vcmp.eq.s32.totalorder %v316, %v353
            %vm361 = vcmp.eq.s32.totalorder %v316, %v357
            %vm362 = vcmp.eq.s32.totalorder %v317, %v353
            %vm363 = vcmp.eq.s32.totalorder %v317, %v357
            %vm364 = vcmp.eq.s32.totalorder %v318, %v353
            %vm365 = vcmp.eq.s32.totalorder %v318, %v357
            %vm366 = vcmp.eq.s32.totalorder %v319, %v353
            %vm367 = vcmp.eq.s32.totalorder %v319, %v357
            %vm368 = vcmp.eq.s32.totalorder %v320, %v353
            %vm369 = vcmp.eq.s32.totalorder %v320, %v357
            %vm370 = vcmp.eq.s32.totalorder %v321, %v353
            %vm371 = vcmp.eq.s32.totalorder %v321, %v357
            %vm372 = vcmp.eq.s32.totalorder %v322, %v353
            %vm373 = vcmp.eq.s32.totalorder %v322, %v357
            %vm374 = vcmp.eq.s32.totalorder %v323, %v353
            %vm375 = vcmp.eq.s32.totalorder %v323, %v357
            %vm376 = vcmp.eq.s32.totalorder %v324, %v353
            %vm377 = vcmp.eq.s32.totalorder %v324, %v357
            %vm378 = vcmp.eq.s32.totalorder %v325, %v353
            %vm379 = vcmp.eq.s32.totalorder %v325, %v357
            %vm380 = vcmp.eq.s32.totalorder %v326, %v353
            %vm381 = vcmp.eq.s32.totalorder %v326, %v357
            %vm382 = vcmp.eq.s32.totalorder %v327, %v353
            %vm383 = vcmp.eq.s32.totalorder %v327, %v357
            %vm384 = vcmp.eq.s32.totalorder %v328, %v353
            %vm385 = vcmp.eq.s32.totalorder %v328, %v357
            %vm386 = vcmp.eq.s32.totalorder %v329, %v353
            %vm387 = vcmp.eq.s32.totalorder %v329, %v357
            %vm388 = vcmp.eq.s32.totalorder %v330, %v353
            %vm389 = vcmp.eq.s32.totalorder %v330, %v357
            %vm390 = vcmp.eq.s32.totalorder %v331, %v353
            %vm391 = vcmp.eq.s32.totalorder %v331, %v357
            %vm392 = vcmp.eq.s32.totalorder %v332, %v353
            %vm393 = vcmp.eq.s32.totalorder %v332, %v357
            %vm394 = vcmp.eq.s32.totalorder %v333, %v353
            %vm395 = vcmp.eq.s32.totalorder %v333, %v357
            %vm396 = vcmp.eq.s32.totalorder %v334, %v353
            %vm397 = vcmp.eq.s32.totalorder %v334, %v357
            %vm398 = vcmp.eq.s32.totalorder %v335, %v353
            %vm399 = vcmp.eq.s32.totalorder %v335, %v357
            %vm400 = vcmp.eq.s32.totalorder %v336, %v353
            %vm401 = vcmp.eq.s32.totalorder %v336, %v357
            %vm402 = vcmp.eq.s32.totalorder %v337, %v353
            %vm403 = vcmp.eq.s32.totalorder %v337, %v357
            %vm404 = vcmp.eq.s32.totalorder %v338, %v353
            %vm405 = vcmp.eq.s32.totalorder %v338, %v357
            %vm406 = vcmp.eq.s32.totalorder %v339, %v353
            %vm407 = vcmp.eq.s32.totalorder %v339, %v357
            %vm408 = vcmp.eq.s32.totalorder %v340, %v353
            %vm409 = vcmp.eq.s32.totalorder %v340, %v357
            %vm410 = vcmp.eq.s32.totalorder %v341, %v353
            %vm411 = vcmp.eq.s32.totalorder %v341, %v357
            %vm412 = vcmp.eq.s32.totalorder %v342, %v353
            %vm413 = vcmp.eq.s32.totalorder %v342, %v357
            %vm414 = vcmp.eq.s32.totalorder %v343, %v353
            %vm415 = vcmp.eq.s32.totalorder %v343, %v357
            %vm416 = vcmp.eq.s32.totalorder %v344, %v353
            %vm417 = vcmp.eq.s32.totalorder %v344, %v357
            %vm418 = vcmp.eq.s32.totalorder %v345, %v353
            %vm419 = vcmp.eq.s32.totalorder %v345, %v357
            %vm420 = vcmp.eq.s32.totalorder %v346, %v353
            %vm421 = vcmp.eq.s32.totalorder %v346, %v357
            %v422 = vsel %vm358, 1, 0
            %v423 = vsel %vm359, 1, 0
            %v424 = vsel %vm360, 1, 0
            %v425 = vsel %vm361, 1, 0
            %v426 = vsel %vm362, 1, 0
            %v427 = vsel %vm363, 1, 0
            %v428 = vsel %vm364, 1, 0
            %v429 = vsel %vm365, 1, 0
            %v430 = vsel %vm366, 1, 0
            %v431 = vsel %vm367, 1, 0
            %v432 = vsel %vm368, 1, 0
            %v433 = vsel %vm369, 1, 0
            %v434 = vsel %vm370, 1, 0
            %v435 = vsel %vm371, 1, 0
            %v436 = vsel %vm372, 1, 0
            %v437 = vsel %vm373, 1, 0
            %v438 = vsel %vm374, 1, 0
            %v439 = vsel %vm375, 1, 0
            %v440 = vsel %vm376, 1, 0
            %v441 = vsel %vm377, 1, 0
            %v442 = vsel %vm378, 1, 0
            %v443 = vsel %vm379, 1, 0
            %v444 = vsel %vm380, 1, 0
            %v445 = vsel %vm381, 1, 0
            %v446 = vsel %vm382, 1, 0
            %v447 = vsel %vm383, 1, 0
            %v448 = vsel %vm384, 1, 0
            %v449 = vsel %vm385, 1, 0
            %v450 = vsel %vm386, 1, 0
            %v451 = vsel %vm387, 1, 0
            %v452 = vsel %vm388, 1, 0
            %v453 = vsel %vm389, 1, 0
            %v454 = vsel %vm390, 1, 0
            %v455 = vsel %vm391, 1, 0
            %v456 = vsel %vm392, 1, 0
            %v457 = vsel %vm393, 1, 0
            %v458 = vsel %vm394, 1, 0
            %v459 = vsel %vm395, 1, 0
            %v460 = vsel %vm396, 1, 0
            %v461 = vsel %vm397, 1, 0
            %v462 = vsel %vm398, 1, 0
            %v463 = vsel %vm399, 1, 0
            %v464 = vsel %vm400, 1, 0
            %v465 = vsel %vm401, 1, 0
            %v466 = vsel %vm402, 1, 0
            %v467 = vsel %vm403, 1, 0
            %v468 = vsel %vm404, 1, 0
            %v469 = vsel %vm405, 1, 0
            %v470 = vsel %vm406, 1, 0
            %v471 = vsel %vm407, 1, 0
            %v472 = vsel %vm408, 1, 0
            %v473 = vsel %vm409, 1, 0
            %v474 = vsel %vm410, 1, 0
            %v475 = vsel %vm411, 1, 0
            %v476 = vsel %vm412, 1, 0
            %v477 = vsel %vm413, 1, 0
            %v478 = vsel %vm414, 1, 0
            %v479 = vsel %vm415, 1, 0
            %v480 = vsel %vm416, 1, 0
            %v481 = vsel %vm417, 1, 0
            %v482 = vsel %vm418, 1, 0
            %v483 = vsel %vm419, 1, 0
            %v484 = vsel %vm420, 1, 0
            %v485 = vsel %vm421, 1, 0
            %v486 = vcvt.s32.f32 %v422
            %v487 = vcvt.s32.f32 %v423
            %v488 = vcvt.s32.f32 %v424
            %v489 = vcvt.s32.f32 %v425
            %v490 = vcvt.s32.f32 %v426
            %v491 = vcvt.s32.f32 %v427
            %v492 = vcvt.s32.f32 %v428
            %v493 = vcvt.s32.f32 %v429
            %v494 = vcvt.s32.f32 %v430
            %v495 = vcvt.s32.f32 %v431
            %v496 = vcvt.s32.f32 %v432
            %v497 = vcvt.s32.f32 %v433
            %v498 = vcvt.s32.f32 %v434
            %v499 = vcvt.s32.f32 %v435
            %v500 = vcvt.s32.f32 %v436
            %v501 = vcvt.s32.f32 %v437
            %v502 = vcvt.s32.f32 %v438
            %v503 = vcvt.s32.f32 %v439
            %v504 = vcvt.s32.f32 %v440
            %v505 = vcvt.s32.f32 %v441
            %v506 = vcvt.s32.f32 %v442
            %v507 = vcvt.s32.f32 %v443
            %v508 = vcvt.s32.f32 %v444
            %v509 = vcvt.s32.f32 %v445
            %v510 = vcvt.s32.f32 %v446
            %v511 = vcvt.s32.f32 %v447
            %v512 = vcvt.s32.f32 %v448
            %v513 = vcvt.s32.f32 %v449
            %v514 = vcvt.s32.f32 %v450
            %v515 = vcvt.s32.f32 %v451
            %v516 = vcvt.s32.f32 %v452
            %v517 = vcvt.s32.f32 %v453
            %v518 = vcvt.s32.f32 %v454
            %v519 = vcvt.s32.f32 %v455
            %v520 = vcvt.s32.f32 %v456
            %v521 = vcvt.s32.f32 %v457
            %v522 = vcvt.s32.f32 %v458
            %v523 = vcvt.s32.f32 %v459
            %v524 = vcvt.s32.f32 %v460
            %v525 = vcvt.s32.f32 %v461
            %v526 = vcvt.s32.f32 %v462
            %v527 = vcvt.s32.f32 %v463
            %v528 = vcvt.s32.f32 %v464
            %v529 = vcvt.s32.f32 %v465
            %v530 = vcvt.s32.f32 %v466
            %v531 = vcvt.s32.f32 %v467
            %v532 = vcvt.s32.f32 %v468
            %v533 = vcvt.s32.f32 %v469
            %v534 = vcvt.s32.f32 %v470
            %v535 = vcvt.s32.f32 %v471
            %v536 = vcvt.s32.f32 %v472
            %v537 = vcvt.s32.f32 %v473
            %v538 = vcvt.s32.f32 %v474
            %v539 = vcvt.s32.f32 %v475
            %v540 = vcvt.s32.f32 %v476
            %v541 = vcvt.s32.f32 %v477
            %v542 = vcvt.s32.f32 %v478
            %v543 = vcvt.s32.f32 %v479
            %v544 = vcvt.s32.f32 %v480
            %v545 = vcvt.s32.f32 %v481
            %v546 = vcvt.s32.f32 %v482
            %v547 = vcvt.s32.f32 %v483
            %v548 = vcvt.s32.f32 %v484
            %v549 = vcvt.s32.f32 %v485
            %v550 = vpack.c.bf16 %v488, %v486
            %v551 = vpack.c.bf16 %v489, %v487
            %v552 = vpack.c.bf16 %v492, %v490
            %v553 = vpack.c.bf16 %v493, %v491
            %v554 = vpack.c.bf16 %v496, %v494
            %v555 = vpack.c.bf16 %v497, %v495
            %v556 = vpack.c.bf16 %v500, %v498
            %v557 = vpack.c.bf16 %v501, %v499
            %v558 = vpack.c.bf16 %v504, %v502
            %v559 = vpack.c.bf16 %v505, %v503
            %v560 = vpack.c.bf16 %v508, %v506
            %v561 = vpack.c.bf16 %v509, %v507
            %v562 = vpack.c.bf16 %v512, %v510
            %v563 = vpack.c.bf16 %v513, %v511
            %v564 = vpack.c.bf16 %v516, %v514
            %v565 = vpack.c.bf16 %v517, %v515
            %v566 = vpack.c.bf16 %v520, %v518
            %v567 = vpack.c.bf16 %v521, %v519
            %v568 = vpack.c.bf16 %v524, %v522
            %v569 = vpack.c.bf16 %v525, %v523
            %v570 = vpack.c.bf16 %v528, %v526
            %v571 = vpack.c.bf16 %v529, %v527
            %v572 = vpack.c.bf16 %v532, %v530
            %v573 = vpack.c.bf16 %v533, %v531
            %v574 = vpack.c.bf16 %v536, %v534
            %v575 = vpack.c.bf16 %v537, %v535
            %v576 = vpack.c.bf16 %v540, %v538
            %v577 = vpack.c.bf16 %v541, %v539
            %v578 = vpack.c.bf16 %v544, %v542
            %v579 = vpack.c.bf16 %v545, %v543
            %v580 = vpack.c.bf16 %v548, %v546
            %v581 = vpack.c.bf16 %v549, %v547
            %v582 = vld [vmem:[%s285] sm:$0xff]
            %v584 = vcombine.high %v582, %v582
            %v586 = vpack.c.bf16 %v582, %v582
            %v587 = vpack.c.bf16 %v584, %v584
            %v588 = vld [vmem:[#allocation2] sm:$0xff]
            %589 = vmatprep.subr.bf16.mxu0 %v551
            %590 = vmatpush1.bf16.msra.mxu0 %v550
            %591 = vmatprep.subr.bf16.mxu0 %v553
            %592 = vmatpush1.bf16.msra.mxu0 %v552
            %593 = vmatprep.subr.bf16.mxu0 %v555
            %594 = vmatpush1.bf16.msra.mxu0 %v554
            %595 = vmatprep.subr.bf16.mxu0 %v557
            %596 = vmatpush1.bf16.msra.mxu0 %v556
            %597 = vmatprep.subr.bf16.mxu0 %v559
            %598 = vmatpush1.bf16.msra.mxu0 %v558
            %599 = vmatprep.subr.bf16.mxu0 %v561
            %600 = vmatpush1.bf16.msra.mxu0 %v560
            %601 = vmatprep.subr.bf16.mxu0 %v563
            %602 = vmatpush1.bf16.msra.mxu0 %v562
            %603 = vmatprep.subr.bf16.mxu0 %v565
            %604 = vmatpush1.bf16.msra.mxu0 %v564
            %605 = vmatprep.subr.bf16.mxu0 %v567
            %606 = vmatpush1.bf16.msra.mxu0 %v566
            %607 = vmatprep.subr.bf16.mxu0 %v569
            %608 = vmatpush1.bf16.msra.mxu0 %v568
            %609 = vmatprep.subr.bf16.mxu0 %v571
            %610 = vmatpush1.bf16.msra.mxu0 %v570
            %611 = vmatprep.subr.bf16.mxu0 %v573
            %612 = vmatpush1.bf16.msra.mxu0 %v572
            %613 = vmatprep.subr.bf16.mxu0 %v575
            %614 = vmatpush1.bf16.msra.mxu0 %v574
            %615 = vmatprep.subr.bf16.mxu0 %v577
            %616 = vmatpush1.bf16.msra.mxu0 %v576
            %617 = vmatprep.subr.bf16.mxu0 %v579
            %618 = vmatpush1.bf16.msra.mxu0 %v578
            %619 = vmatprep.subr.bf16.mxu0 %v581
            %620 = vmatpush1.bf16.msra.mxu0 %v580
            %621 = vmatprep.mubr.bf16.mxu0 %v587
            %622 = vmatmul.mubr.bf16.gmra.mrb[0].mxu0 %v586
            %v623 = vpop.f32.mrb[0].mxu0
            %v624 = vadd.f32 0.0, %v623
            %v625 = vpop.f32.mrb[0].mxu0
            %v626 = vadd.f32 0.0, %v625
            %v627 = vpop.f32.mrb[0].mxu0
            %v628 = vpop.f32.mrb[0].mxu0
            %629 = vdwg.mxu0
            %v632 = vcombine.low %v624, %v626
            %v634 = vadd.f32 %v588, %v632
            %635 = vst [vmem:[#allocation2] sm:$0xff] %v634
          $region44: #{tpu_custom_call.1} parent=35 // pred_fallthru
            _
          // Predicated region
          $region45: #{tpu_custom_call.1} parent=35 // pred_check
            %p636 = pneg %p304
          $region46: #{tpu_custom_call.1} parent=35 // pred_check_branch
            %638 = sbr.rel (%p636) target = $region48
          $region47: #{tpu_custom_call.1} parent=35 // pred_region
            %v639 = vld [vmem:[%s272] sm:$0x3]
            %vm640 = vcmp.ge.s32.totalorder %v639, 0
            %v641 = vld [vmem:[%s293] sm:$0xf]
            %v642 = vld [vmem:[#allocation2] sm:$0xff]
            %v643 = vsel %vm640, 1, 0
            %v644 = vlaneseq
            %v645 = vshrl.u32 %v644, 7
            %v646 = vsub.s32 0, %v645
            %v647 = vrot.slane %v643, %v646
            %v648 = vlaneseq
            %v649 = vshrl.u32 %v648, 7
            %v650 = vsub.s32 1, %v649
            %v651 = vrot.slane %v643, %v650
            %vm652 = vcmp.eq.s32.totalorder %v647, 1
            %vm653 = vcmp.eq.s32.totalorder %v651, 1
            %655 = vset.pattern.permute.xlu0 0
            %656 = vperm.xlu0 %655, %v641
            %v657 = vpop.permute.xlu0 %656
            %v660 = vcombine.high %v642, %v642
            %v662 = vsel %vm652, %v642, %v657
            %v663 = vsel %vm653, %v660, %v657
            %v666 = vcombine.low %v662, %v663
            %668 = vst [vmem:[%s264] sm:$0xff] %v666
          $region48: #{tpu_custom_call.1} parent=35 // pred_fallthru
            _
        $region36: #{tpu_custom_call.1} parent=31 // pred_fallthru
          _
        %p669 = scmp.le.s32.totalorder %s295, 0
        %p670 = scmp.eq.s32.totalorder %s41, 0
        %p671 = pnand %p669, %p670
        %p672 = pneg %p671
        // Predicated region
        $region49: #{tpu_custom_call.1} parent=31 // pred_check
          _
        $region50: #{tpu_custom_call.1} parent=31 // pred_check_branch
          %674 = sbr.rel (%p671) target = $region52
        $region51: #{tpu_custom_call.1} parent=31 // pred_region
          %v675 = vld [vmem:[%s285] sm:$0xff]
          %676 = vst [vmem:[%s264] sm:$0xff] %v675
        $region52: #{tpu_custom_call.1} parent=31 // pred_fallthru
          _
        %s677 = sand.u32 %s151, 1
        %s678 = scalar_lea.sflag [#allocation8], %s677
        %s679 = sand.u32 %s151, 1
        %s680 = smul.addr %s679, 8
        %s681 = scalar_lea.vmem [#allocation7], %s680
        // Predicated region
        $region53: #{tpu_custom_call.1} parent=31 // pred_check
          %p682 = pneg %p161
        $region54: #{tpu_custom_call.1} parent=31 // pred_check_branch
          %684 = sbr.rel (%p682) target = $region56
        $region55: #{tpu_custom_call.1} parent=31 // pred_region
          %s685 = smul.u32 2, %s40
          %s687 = ssub.s32 128, 128
          %688 = vsyncadd %s678, %s687
          %s689 = smul.addr %s39, 2
          %s690 = sadd.s32 %s685, %s689
          %s691 = smul.addr %s690, 64
          %s692 = scalar_lea.hbm %s6, %s691
          %s694 = sshll.u32 %s681, 4
          %s695 = int_to_ptr.vmem [resolvable:$true] %s694
          %697 = dma.vmem_to_hbm [thread:$0]  %s695, 128, %s692, %s678
        $region56: #{tpu_custom_call.1} parent=31 // pred_fallthru
          _
      $region32: #{tpu_custom_call.1} parent=5 // pred_fallthru
        _
      %p698 = scmp.le.s32.totalorder 2, %s29
      // Predicated region
      $region57: #{tpu_custom_call.1} parent=5 // pred_check
        %p699 = pneg %p698
      $region58: #{tpu_custom_call.1} parent=5 // pred_check_branch
        %701 = sbr.rel (%p699) target = $region60
      $region59: #{tpu_custom_call.1} parent=5 // pred_region
        %s702 = ssub.s32 %s29, 2
        // Predicated region
        $region61: #{tpu_custom_call.1} parent=59 // pred_check
          %p703 = pneg %p167
        $region62: #{tpu_custom_call.1} parent=59 // pred_check_branch
          %705 = sbr.rel (%p703) target = $region64
        $region63: #{tpu_custom_call.1} parent=59 // pred_region
          %s706 = sand.u32 %s152, 1
          %s707 = scalar_lea.sflag [#allocation8], %s706
          %s708 = sand.u32 %s152, 1
          %s709 = smul.addr %s708, 8
          %s710 = scalar_lea.vmem [#allocation7], %s709
          %711 = dma.done %s707, 128
        $region64: #{tpu_custom_call.1} parent=59 // pred_fallthru
          _
      $region60: #{tpu_custom_call.1} parent=5 // pred_fallthru
        _
    $region6: #{tpu_custom_call.1} parent=1 // loop_footer
      %s33 = sadd.s32 1, %s29
    $region7: #{tpu_custom_call.1} parent=1 // loop_footer_branch
      %28 = sbr.rel target = $region3
    $region8: #{tpu_custom_call.1} parent=1 // loop_exit
      _
    %712 = vsyncpa [#allocation8], 1
    %s713 = scalar_lea.sflag [#allocation8], 1
    %714 = vsyncpa %s713, 1

</llo_original>
